<compile_context>
chip_gen: v7x
topology: tpu7x:2x2x1
jax: 0.10.0
libtpu: 0.0.40
codegen_flags: <defaults>
</compile_context>

<pallas_src>
import functools
import math

import jax
import jax.numpy as jnp
from jax.experimental import pallas as pl
from jax.experimental.pallas import tpu as pltpu

EPS = 1e-5


def _round_up(x, m):
    return (x + m - 1) // m * m


def _pad2d(x, rows, cols):
    r, c = x.shape
    if r == rows and c == cols:
        return x
    return jnp.pad(x, ((0, rows - r), (0, cols - c)))


# ---------------------------------------------------------------------------
# LayerNormalization kernel (buggy-by-design reference semantics)
# ---------------------------------------------------------------------------
def _layernorm_kernel(x_ref, bias_ref, o_ref):
    x = x_ref[...].astype(jnp.float32)
    n = x.shape[-1]
    mean = jnp.mean(x, axis=-1, keepdims=True)
    diff = x - mean
    # Unbiased variance (torch.std default, correction=1).
    var = jnp.sum(diff * diff, axis=-1, keepdims=True) * (1.0 / (n - 1))
    std = jnp.sqrt(var)
    # Per-row scale on the EUP (exact reciprocal) instead of per-element divide.
    scale = EPS * pl.reciprocal(std + EPS, approx=False)
    o_ref[...] = (diff * scale + bias_ref[0, 0]).astype(o_ref.dtype)


def layer_normalization(x, bias, *, max_row_tile=1024, vmem_tile_budget=16 << 20):
    """x: (..., hidden). Normalizes over the last axis; same shape/dtype out."""
    orig_shape = x.shape
    hidden = orig_shape[-1]
    x2d = x.reshape(-1, hidden)
    rows = x2d.shape[0]

    itemsize = jnp.dtype(x.dtype).itemsize
    # sublane packing: 8 rows/vreg for f32, 16 for bf16, 32 for 8-bit.
    align = 8 if itemsize >= 4 else (16 if itemsize == 2 else 32)
    # in + out, double-buffered: ~4 * row_tile * hidden * itemsize bytes.
    per_row = 4 * hidden * itemsize
    row_tile = max(align, min(max_row_tile, vmem_tile_budget // max(per_row, 1)))
    row_tile = (row_tile // align) * align
    row_tile = min(row_tile, _round_up(rows, align))
    row_tile = max(row_tile, align)

    rows_p = _round_up(rows, row_tile)
    x2d = _pad2d(x2d, rows_p, hidden)  # ragged tail padded, sliced off below

    bias_smem = bias.reshape(1, 1).astype(jnp.float32)

    # NOTE: typical d_model is a multiple of 128 (lane-dense); for the tiny
    # test hidden=32 the full-dim block is still legal, just not lane-dense.
    out = pl.pallas_call(
        _layernorm_kernel,
        out_shape=jax.ShapeDtypeStruct((rows_p, hidden), x.dtype),
        grid_spec=pltpu.PrefetchScalarGridSpec(
            num_scalar_prefetch=0,
            grid=(rows_p // row_tile,),
            in_specs=[
                pl.BlockSpec((row_tile, hidden), lambda i: (i, 0)),
                pl.BlockSpec(memory_space=pltpu.MemorySpace.SMEM),  # scalar bias
            ],
            out_specs=pl.BlockSpec((row_tile, hidden), lambda i: (i, 0)),
        ),
        compiler_params=pltpu.CompilerParams(
            dimension_semantics=("parallel",),
            vmem_limit_bytes=32 << 20,
        ),
    )(x2d, bias_smem)
    return out[:rows].reshape(orig_shape)


# ---------------------------------------------------------------------------
# Tiled matmul kernel (used for all Linear layers), with fused ReLU / residual
# ---------------------------------------------------------------------------
def _matmul_kernel(a_ref, b_ref, o_ref, acc_ref, *, apply_relu):
    @pl.when(pl.program_id(2) == 0)
    def _():
        acc_ref[...] = jnp.zeros_like(acc_ref)

    acc_ref[...] += jnp.dot(a_ref[...], b_ref[...],
                            preferred_element_type=jnp.float32)

    @pl.when(pl.program_id(2) == pl.num_programs(2) - 1)
    def _():
        acc = acc_ref[...]
        if apply_relu:
            acc = jnp.maximum(acc, 0.0)
        o_ref[...] = acc.astype(o_ref.dtype)


def _matmul_residual_kernel(a_ref, b_ref, r_ref, o_ref, acc_ref, *, apply_relu):
    @pl.when(pl.program_id(2) == 0)
    def _():
        acc_ref[...] = jnp.zeros_like(acc_ref)

    acc_ref[...] += jnp.dot(a_ref[...], b_ref[...],
                            preferred_element_type=jnp.float32)

    @pl.when(pl.program_id(2) == pl.num_programs(2) - 1)
    def _():
        acc = acc_ref[...]
        if apply_relu:
            acc = jnp.maximum(acc, 0.0)
        o_ref[...] = (acc + r_ref[...].astype(jnp.float32)).astype(o_ref.dtype)


def linear(a, b, *, residual=None, apply_relu=False, tm=256, tn=256, tk=512):
    """a: (M, K) @ b: (K, N) -> (M, N) f32, optional fused ReLU / residual add."""
    M, K = a.shape
    Kb, N = b.shape
    assert K == Kb
    tm = min(tm, _round_up(M, 8))
    tk = min(tk, _round_up(K, 128))
    tn = min(tn, _round_up(N, 128))
    Mp, Kp, Np = _round_up(M, tm), _round_up(K, tk), _round_up(N, tn)

    a_p = _pad2d(a.astype(jnp.float32), Mp, Kp)
    b_p = _pad2d(b.astype(jnp.float32), Kp, Np)
    inputs = [a_p, b_p]
    in_specs = [
        pl.BlockSpec((tm, tk), lambda i, j, k: (i, k)),
        pl.BlockSpec((tk, tn), lambda i, j, k: (k, j)),
    ]
    if residual is not None:
        inputs.append(_pad2d(residual.astype(jnp.float32), Mp, Np))
        in_specs.append(pl.BlockSpec((tm, tn), lambda i, j, k: (i, j)))
        kernel = functools.partial(_matmul_residual_kernel, apply_relu=apply_relu)
    else:
        kernel = functools.partial(_matmul_kernel, apply_relu=apply_relu)

    out = pl.pallas_call(
        kernel,
        out_shape=jax.ShapeDtypeStruct((Mp, Np), jnp.float32),
        grid_spec=pltpu.PrefetchScalarGridSpec(
            num_scalar_prefetch=0,
            grid=(Mp // tm, Np // tn, Kp // tk),
            in_specs=in_specs,
            out_specs=pl.BlockSpec((tm, tn), lambda i, j, k: (i, j)),
            scratch_shapes=[pltpu.VMEM((tm, tn), jnp.float32)],
        ),
        compiler_params=pltpu.CompilerParams(
            dimension_semantics=("parallel", "parallel", "arbitrary"),
            vmem_limit_bytes=32 << 20,
        ),
    )(*inputs)
    return out[:M, :N]


# ---------------------------------------------------------------------------
# Scaled-dot-product attention kernel (one (batch*head) per grid step)
# ---------------------------------------------------------------------------
def _attention_kernel(q_ref, k_ref, v_ref, o_ref, *, scale):
    q = q_ref[0].astype(jnp.float32)   # (Sq, dk)
    k = k_ref[0].astype(jnp.float32)   # (Skv, dk)
    v = v_ref[0].astype(jnp.float32)   # (Skv, dk)
    # scores = q @ k^T / sqrt(dk)  (contract dk without an explicit transpose)
    s = jax.lax.dot_general(q, k, (((1,), (1,)), ((), ())),
                            preferred_element_type=jnp.float32) * scale
    m = jnp.max(s, axis=-1, keepdims=True)
    p = jnp.exp(s - m)
    l = jnp.sum(p, axis=-1, keepdims=True)
    probs = p * pl.reciprocal(l, approx=False)
    o_ref[0] = jnp.dot(probs, v, preferred_element_type=jnp.float32).astype(o_ref.dtype)


def scaled_dot_product_attention(q, k, v):
    """q: (BH, Sq, dk), k/v: (BH, Skv, dk) -> (BH, Sq, dk)."""
    BH, Sq, dk = q.shape
    Skv = k.shape[1]
    scale = 1.0 / math.sqrt(dk)
    return pl.pallas_call(
        functools.partial(_attention_kernel, scale=scale),
        out_shape=jax.ShapeDtypeStruct((BH, Sq, dk), jnp.float32),
        grid_spec=pltpu.PrefetchScalarGridSpec(
            num_scalar_prefetch=0,
            grid=(BH,),
            in_specs=[
                pl.BlockSpec((1, Sq, dk), lambda i: (i, 0, 0)),
                pl.BlockSpec((1, Skv, dk), lambda i: (i, 0, 0)),
                pl.BlockSpec((1, Skv, dk), lambda i: (i, 0, 0)),
            ],
            out_specs=pl.BlockSpec((1, Sq, dk), lambda i: (i, 0, 0)),
        ),
        compiler_params=pltpu.CompilerParams(
            dimension_semantics=("parallel",),
            vmem_limit_bytes=32 << 20,
        ),
    )(q, k, v)


# ---------------------------------------------------------------------------
# Block wrappers
# ---------------------------------------------------------------------------
def _split_heads(t, B, S, num_heads, dk):
    return (t.reshape(B, S, num_heads, dk)
             .transpose(0, 2, 1, 3)
             .reshape(B * num_heads, S, dk))


def self_attention_block(x, w_q, w_k, w_v, w_o, num_heads, residual):
    """q = k = v = x: fused QKV projection (one wide matmul)."""
    B, S, D = x.shape
    dk = D // num_heads

    w_qkv = jnp.concatenate([w_q, w_k, w_v], axis=1)      # (D, 3D), lane-dense N
    qkv = linear(x.reshape(-1, D), w_qkv)                  # (B*S, 3D)
    q = _split_heads(qkv[:, :D], B, S, num_heads, dk)
    k = _split_heads(qkv[:, D:2 * D], B, S, num_heads, dk)
    v = _split_heads(qkv[:, 2 * D:], B, S, num_heads, dk)

    attn = scaled_dot_product_attention(q, k, v)
    attn = (attn.reshape(B, num_heads, S, dk)
                .transpose(0, 2, 1, 3)
                .reshape(B * S, D))
    out = linear(attn, w_o, residual=residual.reshape(-1, D))  # fused residual add
    return out.reshape(B, S, D)


def cross_attention_block(x_q, x_kv, w_q, w_k, w_v, w_o, num_heads, residual):
    """q from x_q, k/v from x_kv: fused KV projection."""
    B, Sq, D = x_q.shape
    Skv = x_kv.shape[1]
    dk = D // num_heads

    q = linear(x_q.reshape(-1, D), w_q)                    # (B*Sq, D)
    w_kv = jnp.concatenate([w_k, w_v], axis=1)             # (D, 2D), lane-dense N
    kv = linear(x_kv.reshape(-1, D), w_kv)                 # (B*Skv, 2D)
    k = _split_heads(kv[:, :D], B, Skv, num_heads, dk)
    v = _split_heads(kv[:, D:], B, Skv, num_heads, dk)
    q = _split_heads(q, B, Sq, num_heads, dk)

    attn = scaled_dot_product_attention(q, k, v)
    attn = (attn.reshape(B, num_heads, Sq, dk)
                .transpose(0, 2, 1, 3)
                .reshape(B * Sq, D))
    out = linear(attn, w_o, residual=residual.reshape(-1, D))  # fused residual add
    return out.reshape(B, Sq, D)


def feed_forward(x, w1, w2, residual):
    B, S, D = x.shape
    h = linear(x.reshape(-1, D), w1, apply_relu=True)           # fused ReLU
    out = linear(h, w2, residual=residual.reshape(-1, D))       # fused residual add
    return out.reshape(B, S, D)


def decoder_block(x, encoder_output, src_mask, target_mask, params):
    # TODO(synk): src_mask / target_mask and dropout are accepted for parity
    # with the reference signature but have no effect: the reference's
    # masked_fill is not in-place (a no-op) and dropout is identity in
    # deterministic / eval mode.
    del src_mask, target_mask
    h = params["num_heads"]

    n1 = layer_normalization(x, params["ln1_bias"])
    x = self_attention_block(n1, params["self_wq"], params["self_wk"],
                             params["self_wv"], params["self_wo"], h, residual=x)

    n2 = layer_normalization(x, params["ln2_bias"])
    x = cross_attention_block(n2, encoder_output, params["cross_wq"],
                              params["cross_wk"], params["cross_wv"],
                              params["cross_wo"], h, residual=x)

    n3 = layer_normalization(x, params["ln3_bias"])
    x = feed_forward(n3, params["ff_w1"], params["ff_w2"], residual=x)
    return x


# ---------------------------------------------------------------------------
# Pure-JAX reference for correctness checking
# ---------------------------------------------------------------------------
def _layer_norm_ref(x, bias):
    mean = jnp.mean(x, axis=-1, keepdims=True)
    n = x.shape[-1]
    var = jnp.sum((x - mean) ** 2, axis=-1, keepdims=True) / (n - 1)
    std = jnp.sqrt(var)
    return EPS * (x - mean) / (std + EPS) + bias


def _mha_ref(x_q, x_kv, w_q, w_k, w_v, w_o, num_heads):
    B, Sq, D = x_q.shape
    Skv = x_kv.shape[1]
    dk = D // num_heads
    q = (x_q @ w_q).reshape(B, Sq, num_heads, dk).transpose(0, 2, 1, 3)
    k = (x_kv @ w_k).reshape(B, Skv, num_heads, dk).transpose(0, 2, 1, 3)
    v = (x_kv @ w_v).reshape(B, Skv, num_heads, dk).transpose(0, 2, 1, 3)
    s = jnp.einsum("bhqd,bhkd->bhqk", q, k) / math.sqrt(dk)
    p = jax.nn.softmax(s, axis=-1)
    o = jnp.einsum("bhqk,bhkd->bhqd", p, v).transpose(0, 2, 1, 3).reshape(B, Sq, D)
    return o @ w_o


def decoder_block_ref(x, enc, params):
    h = params["num_heads"]
    n1 = _layer_norm_ref(x, params["ln1_bias"])
    x = x + _mha_ref(n1, n1, params["self_wq"], params["self_wk"],
                     params["self_wv"], params["self_wo"], h)
    n2 = _layer_norm_ref(x, params["ln2_bias"])
    x = x + _mha_ref(n2, enc, params["cross_wq"], params["cross_wk"],
                     params["cross_wv"], params["cross_wo"], h)
    n3 = _layer_norm_ref(x, params["ln3_bias"])
    x = x + jnp.maximum(n3 @ params["ff_w1"], 0.0) @ params["ff_w2"]
    return x


if __name__ == "__main__":
    key = jax.random.PRNGKey(0)
    batch, seq, enc_seq = 2, 8, 8
    d_model, num_heads, d_ff = 32, 4, 64

    keys = jax.random.split(key, 14)

    def w(k, fan_in, fan_out):
        return jax.random.normal(k, (fan_in, fan_out), jnp.float32) / math.sqrt(fan_in)

    x = jax.random.normal(keys[0], (batch, seq, d_model), jnp.float32)
    encoder_output = jax.random.normal(keys[1], (batch, enc_seq, d_model), jnp.float32)
    src_mask = jnp.ones((batch, 1, seq, enc_seq), jnp.float32)
    target_mask = jnp.ones((batch, 1, seq, seq), jnp.float32)

    params = {
        "num_heads": num_heads,
        "ln1_bias": jnp.zeros((1,), jnp.float32),
        "ln2_bias": jnp.zeros((1,), jnp.float32),
        "ln3_bias": jnp.zeros((1,), jnp.float32),
        "self_wq": w(keys[2], d_model, d_model),
        "self_wk": w(keys[3], d_model, d_model),
        "self_wv": w(keys[4], d_model, d_model),
        "self_wo": w(keys[5], d_model, d_model),
        "cross_wq": w(keys[6], d_model, d_model),
        "cross_wk": w(keys[7], d_model, d_model),
        "cross_wv": w(keys[8], d_model, d_model),
        "cross_wo": w(keys[9], d_model, d_model),
        "ff_w1": w(keys[10], d_model, d_ff),
        "ff_w2": w(keys[11], d_ff, d_model),
    }

    out = decoder_block(x, encoder_output, src_mask, target_mask, params)
    out = jax.block_until_ready(out)

    ref = decoder_block_ref(x, encoder_output, params)
    assert out.shape == x.shape
    max_err = jnp.max(jnp.abs(out - ref))
    assert jnp.allclose(out, ref, atol=1e-5, rtol=1e-5), f"mismatch: {max_err}"

    print("KERNEL_OK")
</pallas_src>

<mosaic_0001>
module attributes {stable_mosaic.version = 11 : i64} {
  func.func @_layernorm_kernel(%arg0: i32, %arg1: memref<16x32xf32, #tpu.memory_space<vmem>>, %arg2: memref<1x1xf32, #tpu.memory_space<smem>>, %arg3: memref<16x32xf32, #tpu.memory_space<vmem>>) attributes {dimension_semantics = [#tpu.dimension_semantics<parallel>], iteration_bounds = array<i64: 1>, scalar_prefetch = 0 : i64, scratch_operands = 0 : i64, tpu.core_type = #tpu.core_type<tc>, window_params = [{transform_indices = @transform_0, window_bounds = array<i64: 16, 32>}, {transform_indices = @transform_1, window_bounds = array<i64: 1, 1>}, {transform_indices = @transform_2, window_bounds = array<i64: 16, 32>}]} {
    %c0 = arith.constant 0 : index
    %c0_0 = arith.constant 0 : index
    %0 = vector.load %arg1[%c0, %c0_0] : memref<16x32xf32, #tpu.memory_space<vmem>>, vector<16x32xf32>
    %cst = arith.constant dense<0.000000e+00> : vector<16xf32>
    %1 = vector.multi_reduction <add>, %0, %cst [1] : vector<16x32xf32> to vector<16xf32>
    %2 = vector.shape_cast %1 : vector<16xf32> to vector<16x1xf32>
    %cst_1 = arith.constant 3.200000e+01 : f32
    %3 = vector.broadcast %cst_1 : f32 to vector<16x1xf32>
    %4 = arith.divf %2, %3 : vector<16x1xf32>
    %5 = vector.broadcast %4 : vector<16x1xf32> to vector<16x32xf32>
    %6 = arith.subf %0, %5 : vector<16x32xf32>
    %7 = arith.mulf %6, %6 : vector<16x32xf32>
    %cst_2 = arith.constant dense<0.000000e+00> : vector<16xf32>
    %8 = vector.multi_reduction <add>, %7, %cst_2 [1] : vector<16x32xf32> to vector<16xf32>
    %9 = vector.shape_cast %8 : vector<16xf32> to vector<16x1xf32>
    %cst_3 = arith.constant 0.0322580636 : f32
    %10 = vector.broadcast %cst_3 : f32 to vector<16x1xf32>
    %11 = arith.mulf %9, %10 : vector<16x1xf32>
    %12 = math.sqrt %11 : vector<16x1xf32>
    %cst_4 = arith.constant 9.99999974E-6 : f32
    %13 = vector.broadcast %cst_4 : f32 to vector<16x1xf32>
    %14 = arith.addf %12, %13 : vector<16x1xf32>
    %15 = tpu.reciprocal %14 : vector<16x1xf32> -> vector<16x1xf32>
    %cst_5 = arith.constant 9.99999974E-6 : f32
    %16 = vector.broadcast %cst_5 : f32 to vector<16x1xf32>
    %17 = arith.mulf %16, %15 : vector<16x1xf32>
    %18 = vector.broadcast %17 : vector<16x1xf32> to vector<16x32xf32>
    %19 = arith.mulf %6, %18 : vector<16x32xf32>
    %c0_6 = arith.constant 0 : index
    %c0_7 = arith.constant 0 : index
    %20 = memref.load %arg2[%c0_6, %c0_7] : memref<1x1xf32, #tpu.memory_space<smem>>
    %21 = vector.broadcast %20 : f32 to vector<16x32xf32>
    %22 = arith.addf %19, %21 : vector<16x32xf32>
    %c0_8 = arith.constant 0 : index
    %c0_9 = arith.constant 0 : index
    %23 = vector.load %arg3[%c0_8, %c0_9] : memref<16x32xf32, #tpu.memory_space<vmem>>, vector<16x32xf32>
    tpu.vector_store %arg3[%c0_8, %c0_9], %22 {strides = array<i32>} : memref<16x32xf32, #tpu.memory_space<vmem>>, vector<16x32xf32>,
    return
  }
  func.func @transform_0(%arg0: i32) -> (i32, i32) {
    %c0_i32 = arith.constant 0 : i32
    %c0_i32_0 = arith.constant 0 : i32
    return %arg0, %c0_i32 : i32, i32
  }
  func.func @transform_1(%arg0: i32) -> (i32, i32) {
    %c0_i32 = arith.constant 0 : i32
    %c0_i32_0 = arith.constant 0 : i32
    %c0_i32_1 = arith.constant 0 : i32
    return %c0_i32, %c0_i32_0 : i32, i32
  }
  func.func @transform_2(%arg0: i32) -> (i32, i32) {
    %c0_i32 = arith.constant 0 : i32
    %c0_i32_0 = arith.constant 0 : i32
    return %arg0, %c0_i32 : i32, i32
  }
}

</mosaic_0001>

<llo_original>
// kernel: tpu_custom_call.1
$region0: #{tpu_custom_call.1}
  #allocation0 [shape = 'u32[]', space=smem, size = 0x4, offset = 0x4, fixed_abs, tag = 'smem constant byte address 0x4 - core index']
  #allocation1 [shape = 'u32[144,128]{1,0:T(1,128)}', space=vmem, size = 0x12000, scoped, tag = 'internal scratch']
  #allocation2 [shape = 'f32[1,1]{1,0:T(1,128)S(6)}', space=smem, size = 0x200, scoped, tag = 'scoped memory for tpu_custom_call.1']
  %s0 = inlined_call_operand.hbm [shape: f32[16,32], index: 0, kind: input, shape index: {}]
  %s1 = inlined_call_operand.<no memory space> [shape: f32[1,1], index: 1, kind: input, shape index: {}]
  %s2 = inlined_call_operand.hbm [shape: f32[16,32], index: 2, kind: output, shape index: {}]
  %s3 = sld [smem:[#allocation0]]
  $region22: #{tpu_custom_call.1} parent=0
    _
  %s5 = ssub.s32 1, %s3
  %s6 = scalar_select 0, %s5, %s3
  %7 = sst [smem:[#allocation2]] %s1
  $region1: #{tpu_custom_call.1} parent=0
    #allocation3 [shape = 'u8[8192]{0}', space=vmem, size = 0x2000, scoped, tag = 'input window, operand 0, single buffered']
    #allocation4 [shape = 's32[1]{0}', space=sflag, size = 0x4, scoped, tag = 'scoped memory for tpu_custom_call.1']
    #allocation5 [shape = 's32[1]{0}', space=sflag, size = 0x4, scoped, tag = 'scoped memory for tpu_custom_call.1']
    #allocation6 [shape = 'u8[8192]{0}', space=vmem, size = 0x2000, scoped, tag = 'output window, operand 0, single buffered']
    %8 = vsyncpa [#allocation4], 0
    %9 = vsyncpa [#allocation5], 0
    // Predicated region
    $region2: #{tpu_custom_call.1} parent=1 // pred_check
      _
    $region3: #{tpu_custom_call.1} parent=1 // pred_check_branch
      %11 = sbr.rel (0) target = $region5
    $region4: #{tpu_custom_call.1} parent=1 // pred_region
      %s13 = ssub.s32 256, 256
      %14 = vsyncadd [#allocation4], %s13
      %s15 = sshll.u32 [#allocation3], 4
      %s16 = int_to_ptr.vmem [resolvable:$true] %s15
      %21 = dma.hbm_to_vmem [thread:$0]  %s0, 256, %s16, [#allocation4], 128, 128, 8
    $region5: #{tpu_custom_call.1} parent=1 // pred_fallthru
      _
    // Predicated region
    $region6: #{tpu_custom_call.1} parent=1 // pred_check
      _
    $region7: #{tpu_custom_call.1} parent=1 // pred_check_branch
      %23 = sbr.rel (0) target = $region9
    $region8: #{tpu_custom_call.1} parent=1 // pred_region
      _
    $region9: #{tpu_custom_call.1} parent=1 // pred_fallthru
      _
    // Predicated region
    $region10: #{tpu_custom_call.1} parent=1 // pred_check
      _
    $region11: #{tpu_custom_call.1} parent=1 // pred_check_branch
      %25 = sbr.rel (0) target = $region13
    $region12: #{tpu_custom_call.1} parent=1 // pred_region
      %26 = dma.done [#allocation4], 256
    $region13: #{tpu_custom_call.1} parent=1 // pred_fallthru
      _
    %v27 = vld [vmem:[#allocation3] sm:$0xff]
    %v28 = vld [vmem:[#allocation3 + $0x8] sm:$0xff]
    %vm29 = vcmask 261120
    %v30 = vsel %vm29, %v27, 0.0
    %31 = vadd.xlane.f32.xlu0 %v30
    %v32 = vpop.xlane.xlu0 %31
    %v33 = vsel %vm29, %v28, 0.0
    %34 = vadd.xlane.f32.xlu0 %v33
    %v35 = vpop.xlane.xlu0 %34
    %v36 = vrcp.pop 32.0
    %v37 = vmul.f32 %v32, %v36
    %v38 = vmul.f32 %v35, %v36
    %v39 = vsub.f32 %v27, %v37
    %v40 = vsub.f32 %v28, %v38
    %v41 = vmul.f32 %v39, %v39
    %v42 = vmul.f32 %v40, %v40
    %v43 = vsel %vm29, %v41, 0.0
    %44 = vadd.xlane.f32.xlu0 %v43
    %v45 = vpop.xlane.xlu0 %44
    %v46 = vsel %vm29, %v42, 0.0
    %47 = vadd.xlane.f32.xlu0 %v46
    %v48 = vpop.xlane.xlu0 %47
    %v49 = vmul.f32 %v45, 0.032258064
    %v50 = vmul.f32 %v48, 0.032258064
    %v51 = vrsqrt.pop %v49
    %v52 = vmul.f32 %v49, %v51
    %vm53 = vcmp.eq.f32.partialorder %v49, inf
    %v54 = vsel %vm53, %v49, %v52
    %vm55 = vcmp.eq.f32.partialorder %v49, 0.0
    %v56 = vand.u32 %v49, 2147483648
    %v57 = vsel %vm55, %v56, %v54
    %v58 = vrsqrt.pop %v50
    %v59 = vmul.f32 %v50, %v58
    %vm60 = vcmp.eq.f32.partialorder %v50, inf
    %v61 = vsel %vm60, %v50, %v59
    %vm62 = vcmp.eq.f32.partialorder %v50, 0.0
    %v63 = vand.u32 %v50, 2147483648
    %v64 = vsel %vm62, %v63, %v61
    %v65 = vadd.f32 %v57, 1e-05
    %v66 = vadd.f32 %v64, 1e-05
    %v67 = vrcp.pop %v65
    %v68 = vrcp.pop %v66
    %v69 = vmul.f32 %v67, 1e-05
    %v70 = vmul.f32 %v68, 1e-05
    %v71 = vmul.f32 %v39, %v69
    %v72 = vmul.f32 %v40, %v70
    %s73 = sld [smem:[#allocation2]]
    %v74 = vstv %s73
    %v75 = vadd.f32 %v71, %v74
    %v76 = vadd.f32 %v72, %v74
    %77 = vst.msk [vmem:[#allocation6] sm:$0xff] %vm29, %v75
    %78 = vst.msk [vmem:[#allocation6 + $0x8] sm:$0xff] %vm29, %v76
    // Predicated region
    $region14: #{tpu_custom_call.1} parent=1 // pred_check
      _
    $region15: #{tpu_custom_call.1} parent=1 // pred_check_branch
      %80 = sbr.rel (0) target = $region17
    $region16: #{tpu_custom_call.1} parent=1 // pred_region
      %s82 = ssub.s32 256, 256
      %83 = vsyncadd [#allocation5], %s82
      %s84 = sshll.u32 [#allocation6], 4
      %s85 = int_to_ptr.vmem [resolvable:$true] %s84
      %90 = dma.vmem_to_hbm [thread:$0]  %s85, 256, %s2, [#allocation5], 128, 128, 8
    $region17: #{tpu_custom_call.1} parent=1 // pred_fallthru
      _
    // Predicated region
    $region18: #{tpu_custom_call.1} parent=1 // pred_check
      _
    $region19: #{tpu_custom_call.1} parent=1 // pred_check_branch
      %92 = sbr.rel (0) target = $region21
    $region20: #{tpu_custom_call.1} parent=1 // pred_region
      %93 = dma.done [#allocation5], 256
    $region21: #{tpu_custom_call.1} parent=1 // pred_fallthru
      _
    %94 = vsyncpa [#allocation4], 1
    %95 = vsyncpa [#allocation5], 1

</llo_original>
